<compile_context>
chip_gen: v6e
topology: v6e:2x2x1
jax: 0.10.0
libtpu: 0.0.40
codegen_flags: <defaults>
</compile_context>

<pallas_src>
import functools
import math

import jax
import jax.numpy as jnp
from jax.experimental import pallas as pl
from jax.experimental.pallas import tpu as pltpu


def _device_kind() -> str:
    try:
        return jax.devices()[0].device_kind.lower()
    except Exception:
        return ""


def _size_embed_kernel(s_ref, w1_ref, b1_ref, w2_ref, b2_ref, o_ref, *,
                       half, max_period, fuse_first_dot):
    # s_ref : (blk, 1) f32      -- flattened size scalars (padded rows are 0)
    # w1_ref: (2*half, H)       -- first Linear weight, [cos-half ; sin-half]
    # b1_ref: (1, H), w2_ref: (H, H), b2_ref: (1, H)   (param dtype, e.g. bf16)
    # o_ref : (blk, H)

    # sinusoidal frequencies, computed on-chip (no HBM traffic for constants)
    k = jax.lax.broadcasted_iota(jnp.int32, (1, half), 1).astype(jnp.float32)
    freqs = jnp.exp(k * (-math.log(max_period) / half))        # (1, half)

    args = s_ref[...] * freqs                                  # (blk, half) f32
    cos_a = jnp.cos(args)
    sin_a = jnp.sin(args)

    wdt = w1_ref.dtype
    if fuse_first_dot:
        # concat at a 128-lane (vreg-aligned) boundary: pure placement, no shuffle.
        emb = jnp.concatenate([cos_a, sin_a], axis=-1).astype(wdt)   # (blk, 2*half)
        h = jnp.dot(emb, w1_ref[...], preferred_element_type=jnp.float32)
    else:
        # 128-deep MXU (v2-v5): two half-depth dots avoid a wasted weight push.
        h = jnp.dot(cos_a.astype(wdt), w1_ref[0:half, :],
                    preferred_element_type=jnp.float32)
        h = h + jnp.dot(sin_a.astype(wdt), w1_ref[half:2 * half, :],
                        preferred_element_type=jnp.float32)
    h = h + b1_ref[...].astype(jnp.float32)

    # SiLU: exp on EUP, approx reciprocal also on EUP (VPU slot stays free)
    h = h * pl.reciprocal(1.0 + jnp.exp(-h), approx=True)

    out = jnp.dot(h.astype(w2_ref.dtype), w2_ref[...],
                  preferred_element_type=jnp.float32)
    out = out + b2_ref[...].astype(jnp.float32)
    o_ref[...] = out.astype(o_ref.dtype)


def _size_embedder_pallas(s_flat, w1, b1, w2, b2, *, max_period=10000.0):
    """Fused sinusoidal-embedding + MLP.  s_flat: (N,) -> (N, H) in param dtype."""
    N = int(s_flat.shape[0])
    freq_dim, H = w1.shape
    assert freq_dim % 2 == 0, "odd frequency_embedding_size not supported"
    # TODO(synk): PyTorch zero-pads one extra column when frequency_embedding_size is odd.
    half = freq_dim // 2

    kind = _device_kind()
    two_cores = "v7" in kind                                    # v7x: 2 TCs/chip
    fuse_first_dot = not any(g in kind for g in ("v2", "v3", "v4", "v5"))

    # Row tiling: sublane-dense blocks, lane-dense (blk, H) output slabs.
    if two_cores:
        if N <= 512:
            n_pad = max(16, pl.cdiv(N, 16) * 16)
            blk = n_pad // 2          # >= 2 grid steps so both TensorCores get work
        else:
            blk = 256
            n_pad = pl.cdiv(N, blk) * blk
    else:
        if N <= 512:
            n_pad = max(8, pl.cdiv(N, 8) * 8)
            blk = n_pad               # single dense step
        else:
            blk = 512                 # amortize ~0.35us per-grid-step overhead
            n_pad = pl.cdiv(N, blk) * blk

    s_col = jnp.zeros((n_pad, 1), jnp.float32).at[:N, 0].set(s_flat.astype(jnp.float32))

    wbytes = jnp.dtype(w1.dtype).itemsize
    cost = pl.CostEstimate(
        flops=2 * n_pad * H * (freq_dim + H),
        transcendentals=n_pad * (freq_dim + H),
        bytes_accessed=(4 * n_pad
                        + wbytes * (freq_dim * H + H * H + 2 * H)
                        + wbytes * n_pad * H),
    )

    kernel = functools.partial(_size_embed_kernel, half=half,
                               max_period=max_period,
                               fuse_first_dot=fuse_first_dot)

    def _run(single_buffer_weights):
        def wspec(shape):
            imap = lambda i: (0, 0)
            if single_buffer_weights:
                # grid-invariant weights: double buffering only burns VMEM
                return pl.BlockSpec(shape, imap, pipeline_mode=pl.Buffered(1))
            return pl.BlockSpec(shape, imap)

        return pl.pallas_call(
            kernel,
            out_shape=jax.ShapeDtypeStruct((n_pad, H), w1.dtype),
            grid=(n_pad // blk,),
            in_specs=[
                pl.BlockSpec((blk, 1), lambda i: (i, 0)),      # s (rows tile)
                wspec((freq_dim, H)),                          # W1 (resident)
                wspec((1, H)),                                 # b1
                wspec((H, H)),                                 # W2
                wspec((1, H)),                                 # b2
            ],
            out_specs=pl.BlockSpec((blk, H), lambda i: (i, 0)),
            compiler_params=pltpu.CompilerParams(
                dimension_semantics=("parallel",),
            ),
            cost_estimate=cost,
        )(s_col, w1, b1.reshape(1, H), w2, b2.reshape(1, H))

    try:
        out = _run(True)
    except Exception:
        # Fallback for jax builds without Buffered(1) support on TPU pallas_call.
        out = _run(False)

    return out[:N]


class SizeEmbedder:
    """JAX/Pallas port of OpenSora's SizeEmbedder (sinusoidal embed + MLP)."""

    def __init__(self, hidden_size, frequency_embedding_size=256, *, key,
                 dtype=jnp.bfloat16, max_period=10000.0):
        k1, k2, k3, k4 = jax.random.split(key, 4)
        fe, H = frequency_embedding_size, hidden_size
        # Weights stored (in, out) so forward is x @ W + b (same math as nn.Linear).
        self.w1 = (jax.random.normal(k1, (fe, H)) * 0.02).astype(dtype)
        self.b1 = (jax.random.normal(k2, (H,)) * 0.02).astype(dtype)
        self.w2 = (jax.random.normal(k3, (H, H)) * 0.02).astype(dtype)
        self.b2 = (jax.random.normal(k4, (H,)) * 0.02).astype(dtype)
        self.frequency_embedding_size = fe
        self.outdim = H
        self.max_period = max_period

    @property
    def dtype(self):
        return self.w1.dtype

    def __call__(self, s, bs):
        if s.ndim == 1:
            s = s[:, None]
        assert s.ndim == 2
        if s.shape[0] != bs:
            assert bs % s.shape[0] == 0
            s = jnp.tile(s, (bs // s.shape[0], 1))
        b, dims = s.shape
        s_flat = s.reshape(b * dims)
        emb = _size_embedder_pallas(
            s_flat, self.w1, self.b1, self.w2, self.b2, max_period=self.max_period
        )
        return emb.reshape(b, dims * self.outdim)


def _reference_forward(s, bs, m: SizeEmbedder):
    """Pure-JAX reference mirroring the PyTorch SizeEmbedder.forward."""
    if s.ndim == 1:
        s = s[:, None]
    if s.shape[0] != bs:
        s = jnp.tile(s, (bs // s.shape[0], 1))
    b, d = s.shape
    t = s.reshape(-1).astype(jnp.float32)
    half = m.frequency_embedding_size // 2
    freqs = jnp.exp(
        -math.log(m.max_period) * jnp.arange(half, dtype=jnp.float32) / half
    )
    args = t[:, None] * freqs[None]
    emb = jnp.concatenate([jnp.cos(args), jnp.sin(args)], axis=-1).astype(m.dtype)
    h = emb @ m.w1 + m.b1
    h = h / (1.0 + jnp.exp(-h))
    out = h @ m.w2 + m.b2
    return out.reshape(b, d * m.outdim)


if __name__ == "__main__":
    hidden_size = 128
    freq_dim = 256
    bs = 2

    root = jax.random.PRNGKey(0)
    k_params, k_sizes = jax.random.split(root)

    embedder = SizeEmbedder(hidden_size, freq_dim, key=k_params)
    tol = 2e-2 if embedder.dtype == jnp.bfloat16 else 1e-3

    # sizes, e.g. (height, width) tokens per batch element -> (bs, 2)
    s = jax.random.randint(k_sizes, (bs, 2), 0, 64).astype(jnp.float32)

    out = jax.block_until_ready(embedder(s, bs))
    ref = _reference_forward(s, bs, embedder)
    assert out.shape == (bs, 2 * hidden_size)
    assert jnp.allclose(out.astype(jnp.float32), ref.astype(jnp.float32),
                        rtol=tol, atol=tol)

    # also exercise the 1-D input + repeat-to-batch path
    s1 = jnp.array([37.0])
    out1 = jax.block_until_ready(embedder(s1, bs))
    ref1 = _reference_forward(s1, bs, embedder)
    assert out1.shape == (bs, hidden_size)
    assert jnp.allclose(out1.astype(jnp.float32), ref1.astype(jnp.float32),
                        rtol=tol, atol=tol)

    print("KERNEL_OK")
</pallas_src>

<mosaic_0001>
module attributes {stable_mosaic.version = 11 : i64} {
  func.func @_size_embed_kernel(%arg0: i32, %arg1: memref<8x1xf32, #tpu.memory_space<vmem>>, %arg2: memref<256x128xbf16, #tpu.memory_space<vmem>>, %arg3: memref<1x128xbf16, #tpu.memory_space<vmem>>, %arg4: memref<128x128xbf16, #tpu.memory_space<vmem>>, %arg5: memref<1x128xbf16, #tpu.memory_space<vmem>>, %arg6: memref<8x128xbf16, #tpu.memory_space<vmem>>) attributes {dimension_semantics = [#tpu.dimension_semantics<parallel>], iteration_bounds = array<i64: 1>, scalar_prefetch = 0 : i64, scratch_operands = 0 : i64, tpu.core_type = #tpu.core_type<tc>, window_params = [{transform_indices = @transform_0, window_bounds = array<i64: 8, 1>}, {pipeline_mode = #tpu.pipeline_mode<synchronous>, transform_indices = @transform_1, window_bounds = array<i64: 256, 128>}, {pipeline_mode = #tpu.pipeline_mode<synchronous>, transform_indices = @transform_2, window_bounds = array<i64: 1, 128>}, {pipeline_mode = #tpu.pipeline_mode<synchronous>, transform_indices = @transform_3, window_bounds = array<i64: 128, 128>}, {pipeline_mode = #tpu.pipeline_mode<synchronous>, transform_indices = @transform_4, window_bounds = array<i64: 1, 128>}, {transform_indices = @transform_5, window_bounds = array<i64: 8, 128>}]} {
    %0 = tpu.iota {dimensions = array<i32: 1>} : vector<1x128xi32>
    %1 = arith.sitofp %0 : vector<1x128xi32> to vector<1x128xf32>
    %cst = arith.constant -0.0719557852 : f32
    %2 = vector.broadcast %cst : f32 to vector<1x128xf32>
    %3 = arith.mulf %1, %2 : vector<1x128xf32>
    %4 = math.exp %3 : vector<1x128xf32>
    %c0 = arith.constant 0 : index
    %c0_0 = arith.constant 0 : index
    %5 = vector.load %arg1[%c0, %c0_0] : memref<8x1xf32, #tpu.memory_space<vmem>>, vector<8x1xf32>
    %6 = vector.broadcast %5 : vector<8x1xf32> to vector<8x128xf32>
    %7 = vector.broadcast %4 : vector<1x128xf32> to vector<8x128xf32>
    %8 = arith.mulf %6, %7 : vector<8x128xf32>
    %9 = math.cos %8 : vector<8x128xf32>
    %10 = math.sin %8 : vector<8x128xf32>
    %11 = tpu.concatenate %9, %10 in 1 : vector<8x128xf32>, vector<8x128xf32> -> vector<8x256xf32>
    %12 = arith.truncf %11 : vector<8x256xf32> to vector<8x256xbf16>
    %c0_1 = arith.constant 0 : index
    %c0_2 = arith.constant 0 : index
    %13 = vector.load %arg2[%c0_1, %c0_2] : memref<256x128xbf16, #tpu.memory_space<vmem>>, vector<256x128xbf16>
    %cst_3 = arith.constant dense<0.000000e+00> : vector<8x128xf32>
    %14 = tpu.matmul %12, %13, %cst_3 {dimension_numbers = #tpu.dot_dimension_numbers<[1], [0], [0], [1], [0, 0, 1, 1], [], []>} : vector<8x256xbf16>, vector<256x128xbf16>, vector<8x128xf32> -> vector<8x128xf32>
    %c0_4 = arith.constant 0 : index
    %c0_5 = arith.constant 0 : index
    %15 = vector.load %arg3[%c0_4, %c0_5] : memref<1x128xbf16, #tpu.memory_space<vmem>>, vector<1x128xbf16>
    %16 = arith.extf %15 : vector<1x128xbf16> to vector<1x128xf32>
    %17 = vector.broadcast %16 : vector<1x128xf32> to vector<8x128xf32>
    %18 = arith.addf %14, %17 : vector<8x128xf32>
    %cst_6 = arith.constant 0.000000e+00 : f32
    %19 = vector.broadcast %cst_6 : f32 to vector<8x128xf32>
    %20 = arith.subf %19, %18 : vector<8x128xf32>
    %21 = math.exp %20 : vector<8x128xf32>
    %cst_7 = arith.constant 1.000000e+00 : f32
    %22 = vector.broadcast %cst_7 : f32 to vector<8x128xf32>
    %23 = arith.addf %22, %21 : vector<8x128xf32>
    %24 = tpu.reciprocal %23 {approx = true} : vector<8x128xf32> -> vector<8x128xf32>
    %25 = arith.mulf %18, %24 : vector<8x128xf32>
    %26 = arith.truncf %25 : vector<8x128xf32> to vector<8x128xbf16>
    %c0_8 = arith.constant 0 : index
    %c0_9 = arith.constant 0 : index
    %27 = vector.load %arg4[%c0_8, %c0_9] : memref<128x128xbf16, #tpu.memory_space<vmem>>, vector<128x128xbf16>
    %cst_10 = arith.constant dense<0.000000e+00> : vector<8x128xf32>
    %28 = tpu.matmul %26, %27, %cst_10 {dimension_numbers = #tpu.dot_dimension_numbers<[1], [0], [0], [1], [0, 0, 1, 1], [], []>} : vector<8x128xbf16>, vector<128x128xbf16>, vector<8x128xf32> -> vector<8x128xf32>
    %c0_11 = arith.constant 0 : index
    %c0_12 = arith.constant 0 : index
    %29 = vector.load %arg5[%c0_11, %c0_12] : memref<1x128xbf16, #tpu.memory_space<vmem>>, vector<1x128xbf16>
    %30 = arith.extf %29 : vector<1x128xbf16> to vector<1x128xf32>
    %31 = vector.broadcast %30 : vector<1x128xf32> to vector<8x128xf32>
    %32 = arith.addf %28, %31 : vector<8x128xf32>
    %33 = arith.truncf %32 : vector<8x128xf32> to vector<8x128xbf16>
    %c0_13 = arith.constant 0 : index
    %c0_14 = arith.constant 0 : index
    %34 = vector.load %arg6[%c0_13, %c0_14] : memref<8x128xbf16, #tpu.memory_space<vmem>>, vector<8x128xbf16>
    tpu.vector_store %arg6[%c0_13, %c0_14], %33 {strides = array<i32>} : memref<8x128xbf16, #tpu.memory_space<vmem>>, vector<8x128xbf16>,
    return
  }
  func.func @transform_0(%arg0: i32) -> (i32, i32) {
    %c0_i32 = arith.constant 0 : i32
    %c0_i32_0 = arith.constant 0 : i32
    return %arg0, %c0_i32 : i32, i32
  }
  func.func @transform_1(%arg0: i32) -> (i32, i32) {
    %c0_i32 = arith.constant 0 : i32
    %c0_i32_0 = arith.constant 0 : i32
    %c0_i32_1 = arith.constant 0 : i32
    return %c0_i32, %c0_i32_0 : i32, i32
  }
  func.func @transform_2(%arg0: i32) -> (i32, i32) {
    %c0_i32 = arith.constant 0 : i32
    %c0_i32_0 = arith.constant 0 : i32
    %c0_i32_1 = arith.constant 0 : i32
    return %c0_i32, %c0_i32_0 : i32, i32
  }
  func.func @transform_3(%arg0: i32) -> (i32, i32) {
    %c0_i32 = arith.constant 0 : i32
    %c0_i32_0 = arith.constant 0 : i32
    %c0_i32_1 = arith.constant 0 : i32
    return %c0_i32, %c0_i32_0 : i32, i32
  }
  func.func @transform_4(%arg0: i32) -> (i32, i32) {
    %c0_i32 = arith.constant 0 : i32
    %c0_i32_0 = arith.constant 0 : i32
    %c0_i32_1 = arith.constant 0 : i32
    return %c0_i32, %c0_i32_0 : i32, i32
  }
  func.func @transform_5(%arg0: i32) -> (i32, i32) {
    %c0_i32 = arith.constant 0 : i32
    %c0_i32_0 = arith.constant 0 : i32
    return %arg0, %c0_i32 : i32, i32
  }
}

module attributes {stable_mosaic.version = 11 : i64} {
  func.func @_size_embed_kernel(%arg0: i32, %arg1: memref<8x1xf32, #tpu.memory_space<vmem>>, %arg2: memref<256x128xbf16, #tpu.memory_space<vmem>>, %arg3: memref<1x128xbf16, #tpu.memory_space<vmem>>, %arg4: memref<128x128xbf16, #tpu.memory_space<vmem>>, %arg5: memref<1x128xbf16, #tpu.memory_space<vmem>>, %arg6: memref<8x128xbf16, #tpu.memory_space<vmem>>) attributes {dimension_semantics = [#tpu.dimension_semantics<parallel>], iteration_bounds = array<i64: 1>, scalar_prefetch = 0 : i64, scratch_operands = 0 : i64, tpu.core_type = #tpu.core_type<tc>, window_params = [{transform_indices = @transform_0, window_bounds = array<i64: 8, 1>}, {pipeline_mode = #tpu.pipeline_mode<synchronous>, transform_indices = @transform_1, window_bounds = array<i64: 256, 128>}, {pipeline_mode = #tpu.pipeline_mode<synchronous>, transform_indices = @transform_2, window_bounds = array<i64: 1, 128>}, {pipeline_mode = #tpu.pipeline_mode<synchronous>, transform_indices = @transform_3, window_bounds = array<i64: 128, 128>}, {pipeline_mode = #tpu.pipeline_mode<synchronous>, transform_indices = @transform_4, window_bounds = array<i64: 1, 128>}, {transform_indices = @transform_5, window_bounds = array<i64: 8, 128>}]} {
    %0 = tpu.iota {dimensions = array<i32: 1>} : vector<1x128xi32>
    %1 = arith.sitofp %0 : vector<1x128xi32> to vector<1x128xf32>
    %cst = arith.constant -0.0719557852 : f32
    %2 = vector.broadcast %cst : f32 to vector<1x128xf32>
    %3 = arith.mulf %1, %2 : vector<1x128xf32>
    %4 = math.exp %3 : vector<1x128xf32>
    %c0 = arith.constant 0 : index
    %c0_0 = arith.constant 0 : index
    %5 = vector.load %arg1[%c0, %c0_0] : memref<8x1xf32, #tpu.memory_space<vmem>>, vector<8x1xf32>
    %6 = vector.broadcast %5 : vector<8x1xf32> to vector<8x128xf32>
    %7 = vector.broadcast %4 : vector<1x128xf32> to vector<8x128xf32>
    %8 = arith.mulf %6, %7 : vector<8x128xf32>
    %9 = math.cos %8 : vector<8x128xf32>
    %10 = math.sin %8 : vector<8x128xf32>
    %11 = tpu.concatenate %9, %10 in 1 : vector<8x128xf32>, vector<8x128xf32> -> vector<8x256xf32>
    %12 = arith.truncf %11 : vector<8x256xf32> to vector<8x256xbf16>
    %c0_1 = arith.constant 0 : index
    %c0_2 = arith.constant 0 : index
    %13 = vector.load %arg2[%c0_1, %c0_2] : memref<256x128xbf16, #tpu.memory_space<vmem>>, vector<256x128xbf16>
    %cst_3 = arith.constant dense<0.000000e+00> : vector<8x128xf32>
    %14 = tpu.matmul %12, %13, %cst_3 {dimension_numbers = #tpu.dot_dimension_numbers<[1], [0], [0], [1], [0, 0, 1, 1], [], []>} : vector<8x256xbf16>, vector<256x128xbf16>, vector<8x128xf32> -> vector<8x128xf32>
    %c0_4 = arith.constant 0 : index
    %c0_5 = arith.constant 0 : index
    %15 = vector.load %arg3[%c0_4, %c0_5] : memref<1x128xbf16, #tpu.memory_space<vmem>>, vector<1x128xbf16>
    %16 = arith.extf %15 : vector<1x128xbf16> to vector<1x128xf32>
    %17 = vector.broadcast %16 : vector<1x128xf32> to vector<8x128xf32>
    %18 = arith.addf %14, %17 : vector<8x128xf32>
    %cst_6 = arith.constant 0.000000e+00 : f32
    %19 = vector.broadcast %cst_6 : f32 to vector<8x128xf32>
    %20 = arith.subf %19, %18 : vector<8x128xf32>
    %21 = math.exp %20 : vector<8x128xf32>
    %cst_7 = arith.constant 1.000000e+00 : f32
    %22 = vector.broadcast %cst_7 : f32 to vector<8x128xf32>
    %23 = arith.addf %22, %21 : vector<8x128xf32>
    %24 = tpu.reciprocal %23 {approx = true} : vector<8x128xf32> -> vector<8x128xf32>
    %25 = arith.mulf %18, %24 : vector<8x128xf32>
    %26 = arith.truncf %25 : vector<8x128xf32> to vector<8x128xbf16>
    %c0_8 = arith.constant 0 : index
    %c0_9 = arith.constant 0 : index
    %27 = vector.load %arg4[%c0_8, %c0_9] : memref<128x128xbf16, #tpu.memory_space<vmem>>, vector<128x128xbf16>
    %cst_10 = arith.constant dense<0.000000e+00> : vector<8x128xf32>
    %28 = tpu.matmul %26, %27, %cst_10 {dimension_numbers = #tpu.dot_dimension_numbers<[1], [0], [0], [1], [0, 0, 1, 1], [], []>} : vector<8x128xbf16>, vector<128x128xbf16>, vector<8x128xf32> -> vector<8x128xf32>
    %c0_11 = arith.constant 0 : index
    %c0_12 = arith.constant 0 : index
    %29 = vector.load %arg5[%c0_11, %c0_12] : memref<1x128xbf16, #tpu.memory_space<vmem>>, vector<1x128xbf16>
    %30 = arith.extf %29 : vector<1x128xbf16> to vector<1x128xf32>
    %31 = vector.broadcast %30 : vector<1x128xf32> to vector<8x128xf32>
    %32 = arith.addf %28, %31 : vector<8x128xf32>
    %33 = arith.truncf %32 : vector<8x128xf32> to vector<8x128xbf16>
    %c0_13 = arith.constant 0 : index
    %c0_14 = arith.constant 0 : index
    %34 = vector.load %arg6[%c0_13, %c0_14] : memref<8x128xbf16, #tpu.memory_space<vmem>>, vector<8x128xbf16>
    tpu.vector_store %arg6[%c0_13, %c0_14], %33 {strides = array<i32>} : memref<8x128xbf16, #tpu.memory_space<vmem>>, vector<8x128xbf16>,
    return
  }
  func.func @transform_0(%arg0: i32) -> (i32, i32) {
    %c0_i32 = arith.constant 0 : i32
    %c0_i32_0 = arith.constant 0 : i32
    return %arg0, %c0_i32 : i32, i32
  }
  func.func @transform_1(%arg0: i32) -> (i32, i32) {
    %c0_i32 = arith.constant 0 : i32
    %c0_i32_0 = arith.constant 0 : i32
    %c0_i32_1 = arith.constant 0 : i32
    return %c0_i32, %c0_i32_0 : i32, i32
  }
  func.func @transform_2(%arg0: i32) -> (i32, i32) {
    %c0_i32 = arith.constant 0 : i32
    %c0_i32_0 = arith.constant 0 : i32
    %c0_i32_1 = arith.constant 0 : i32
    return %c0_i32, %c0_i32_0 : i32, i32
  }
  func.func @transform_3(%arg0: i32) -> (i32, i32) {
    %c0_i32 = arith.constant 0 : i32
    %c0_i32_0 = arith.constant 0 : i32
    %c0_i32_1 = arith.constant 0 : i32
    return %c0_i32, %c0_i32_0 : i32, i32
  }
  func.func @transform_4(%arg0: i32) -> (i32, i32) {
    %c0_i32 = arith.constant 0 : i32
    %c0_i32_0 = arith.constant 0 : i32
    %c0_i32_1 = arith.constant 0 : i32
    return %c0_i32, %c0_i32_0 : i32, i32
  }
  func.func @transform_5(%arg0: i32) -> (i32, i32) {
    %c0_i32 = arith.constant 0 : i32
    %c0_i32_0 = arith.constant 0 : i32
    return %arg0, %c0_i32 : i32, i32
  }
}

</mosaic_0001>

<llo_original>
// kernel: tpu_custom_call.1
$region0: #{tpu_custom_call.1}
  #allocation0 [shape = 'u32[]', space=smem, size = 0x4, offset = 0x4, fixed_abs, tag = 'smem constant byte address 0x4 - core index']
  #allocation1 [shape = 'u32[144,128]{1,0:T(1,128)}', space=vmem, size = 0x12000, scoped, tag = 'internal scratch']
  %s0 = inlined_call_operand.vmem [shape: f32[8,1], index: 0, kind: input, shape index: {}]
  %s1 = inlined_call_operand.hbm [shape: bf16[256,128], index: 1, kind: input, shape index: {}]
  %s2 = inlined_call_operand.vmem [shape: bf16[1,128], index: 2, kind: input, shape index: {}]
  %s3 = inlined_call_operand.hbm [shape: bf16[128,128], index: 3, kind: input, shape index: {}]
  %s4 = inlined_call_operand.vmem [shape: bf16[1,128], index: 4, kind: input, shape index: {}]
  %s5 = inlined_call_operand.hbm [shape: bf16[8,128], index: 5, kind: output, shape index: {}]
  %s6 = sld [smem:[#allocation0]]
  $region38: #{tpu_custom_call.1} parent=0
    _
  %s8 = ssub.s32 1, %s6
  %s9 = scalar_select 0, %s8, %s6
  $region1: #{tpu_custom_call.1} parent=0
    #allocation2 [shape = 'u8[65536]{0}', space=vmem, size = 0x10000, scoped, tag = 'input window, operand 1, single buffered']
    #allocation3 [shape = 's32[1]{0}', space=sflag, size = 0x4, scoped, tag = 'scoped memory for tpu_custom_call.1']
    #allocation4 [shape = 's32[1]{0}', space=sflag, size = 0x4, scoped, tag = 'scoped memory for tpu_custom_call.1']
    #allocation5 [shape = 'u8[32768]{0}', space=vmem, size = 0x8000, scoped, tag = 'input window, operand 3, single buffered']
    #allocation6 [shape = 's32[1]{0}', space=sflag, size = 0x4, scoped, tag = 'scoped memory for tpu_custom_call.1']
    #allocation7 [shape = 'u8[2048]{0}', space=vmem, size = 0x800, scoped, tag = 'output window, operand 0, single buffered']
    %10 = vsyncpa [#allocation3], 0
    %11 = vsyncpa [#allocation6], 0
    %12 = vsyncpa [#allocation4], 0
    // Predicated region
    $region2: #{tpu_custom_call.1} parent=1 // pred_check
      _
    $region3: #{tpu_custom_call.1} parent=1 // pred_check_branch
      %14 = sbr.rel (0) target = $region5
    $region4: #{tpu_custom_call.1} parent=1 // pred_region
      _
    $region5: #{tpu_custom_call.1} parent=1 // pred_fallthru
      _
    // Predicated region
    $region6: #{tpu_custom_call.1} parent=1 // pred_check
      _
    $region7: #{tpu_custom_call.1} parent=1 // pred_check_branch
      %16 = sbr.rel (0) target = $region9
    $region8: #{tpu_custom_call.1} parent=1 // pred_region
      %s18 = ssub.s32 2048, 2048
      %19 = vsyncadd [#allocation3], %s18
      %s20 = sshll.u32 [#allocation2], 4
      %s21 = int_to_ptr.vmem [resolvable:$true] %s20
      %26 = dma.hbm_to_vmem [thread:$0]  %s1, 2048, %s21, [#allocation3], 64, 64, 4
    $region9: #{tpu_custom_call.1} parent=1 // pred_fallthru
      _
    // Predicated region
    $region10: #{tpu_custom_call.1} parent=1 // pred_check
      _
    $region11: #{tpu_custom_call.1} parent=1 // pred_check_branch
      %28 = sbr.rel (0) target = $region13
    $region12: #{tpu_custom_call.1} parent=1 // pred_region
      _
    $region13: #{tpu_custom_call.1} parent=1 // pred_fallthru
      _
    // Predicated region
    $region14: #{tpu_custom_call.1} parent=1 // pred_check
      _
    $region15: #{tpu_custom_call.1} parent=1 // pred_check_branch
      %30 = sbr.rel (0) target = $region17
    $region16: #{tpu_custom_call.1} parent=1 // pred_region
      %s32 = ssub.s32 1024, 1024
      %33 = vsyncadd [#allocation6], %s32
      %s34 = sshll.u32 [#allocation5], 4
      %s35 = int_to_ptr.vmem [resolvable:$true] %s34
      %40 = dma.hbm_to_vmem [thread:$0]  %s3, 1024, %s35, [#allocation6], 64, 64, 4
    $region17: #{tpu_custom_call.1} parent=1 // pred_fallthru
      _
    // Predicated region
    $region18: #{tpu_custom_call.1} parent=1 // pred_check
      _
    $region19: #{tpu_custom_call.1} parent=1 // pred_check_branch
      %42 = sbr.rel (0) target = $region21
    $region20: #{tpu_custom_call.1} parent=1 // pred_region
      _
    $region21: #{tpu_custom_call.1} parent=1 // pred_fallthru
      _
    // Predicated region
    $region22: #{tpu_custom_call.1} parent=1 // pred_check
      _
    $region23: #{tpu_custom_call.1} parent=1 // pred_check_branch
      %44 = sbr.rel (0) target = $region25
    $region24: #{tpu_custom_call.1} parent=1 // pred_region
      %45 = dma.done [#allocation3], 2048
    $region25: #{tpu_custom_call.1} parent=1 // pred_fallthru
      _
    // Predicated region
    $region26: #{tpu_custom_call.1} parent=1 // pred_check
      _
    $region27: #{tpu_custom_call.1} parent=1 // pred_check_branch
      %47 = sbr.rel (0) target = $region29
    $region28: #{tpu_custom_call.1} parent=1 // pred_region
      %48 = dma.done [#allocation6], 1024
    $region29: #{tpu_custom_call.1} parent=1 // pred_fallthru
      _
    %v50 = vlaneseq
    %v51 = vand.u32 %v50, 127
    %v52 = vcvt.s32.f32 %v51
    %v53 = vmul.f32 %v52, -0.071955785
    %v54 = vmul.f32 %v53, 1.442695
    %v55 = vpow.pop %v54
    %v56 = vld [vmem:[%s0] sm:$0xff]
    %58 = vset.pattern.permute.xlu0 0
    %59 = vperm.xlu0 %58, %v56
    %v60 = vpop.permute.xlu0 %59
    %v62 = vmul.f32 %v60, %v55
    %v63 = vand.u32 2147483647, %v62
    %vm64 = vcmp.le.f32.partialorder %v63, 0.7853982
    %vm65 = vcmp.lt.s32.totalorder %v62, 0
    %v66 = vand.u32 %v62, 2139095040
    %v67 = vshrl.u32 %v66, 23
    %v68 = vsub.s32 %v67, 127
    %v69 = vand.u32 2147483647, %v62
    %v70 = vand.u32 %v69, 8388607
    %v71 = vor.u32 %v70, 8388608
    %v72 = vsub.s32 0, %v71
    %v73 = vadd.s32 %v68, 1
    %vm74 = vcmp.gt.s32.totalorder %v73, 0
    %v75 = vsel %vm74, %v73, 0
    %v76 = vshrl.u32 %v75, 5
    %v77 = vand.u32 %v75, 31
    %v78 = vsub.s32 32, %v77
    %v79 = vshrl.u32 683565275, %v78
    %v80 = vshll.u32 683565275, %v77
    %v81 = vshrl.u32 2475754826, %v78
    %v82 = vor.u32 %v80, %v81
    %v83 = vshll.u32 2475754826, %v77
    %v84 = vshrl.u32 2131351028, %v78
    %v85 = vor.u32 %v83, %v84
    %v86 = vshll.u32 2131351028, %v77
    %v87 = vshrl.u32 2102212464, %v78
    %v88 = vor.u32 %v86, %v87
    %v89 = vshll.u32 2102212464, %v77
    %v90 = vshrl.u32 920167782, %v78
    %v91 = vor.u32 %v89, %v90
    %v92 = vshll.u32 920167782, %v77
    %v93 = vshrl.u32 1326507024, %v78
    %v94 = vor.u32 %v92, %v93
    %vm95 = vcmp.lt.s32.totalorder %v76, 1
    %vm96 = vcmp.lt.s32.totalorder %v76, 2
    %vm97 = vcmp.lt.s32.totalorder %v76, 3
    %vm98 = vcmp.lt.s32.totalorder %v76, 4
    %v99 = vsel %vm95, %v79, %v82
    %v100 = vsel %vm98, %v88, 2102212464
    %v101 = vsel %vm97, %v85, %v100
    %v102 = vsel %vm96, %v99, %v101
    %v103 = vsel %vm95, %v82, %v85
    %v104 = vsel %vm98, %v91, 920167782
    %v105 = vsel %vm97, %v88, %v104
    %v106 = vsel %vm96, %v103, %v105
    %v107 = vsel %vm95, %v85, %v88
    %v108 = vsel %vm98, %v94, 1326507024
    %v109 = vsel %vm97, %v91, %v108
    %v110 = vsel %vm96, %v107, %v109
    %v111 = vshll.u32 %v71, 8
    %v112 = vmul.u32.u64.compose %v111, %v110
    %v113 = vextract.low.u32 %v112
    %v114 = vextract.high.u32 %v112
    %v115 = vmul.u32.u64.compose %v111, %v106
    %v116 = vextract.low.u32 %v115
    %v117 = vextract.high.u32 %v115
    %v118 = vmul.u32 %v111, %v102
    %v119 = vadd.s32 %v114, %v116
    %vm120 = vc.u32 %v114, %v116
    %v121 = vadd.s32 %v117, 1
    %v122 = vsel %vm120, %v121, %v117
    %v123 = vadd.s32 %v118, %v122
    %v124 = vadd.s32 %v123, 536870912
    %v125 = vshrl.u32 %v124, 30
    %v126 = vshll.u32 %v125, 30
    %v127 = vsub.s32 %v123, %v126
    %vm128 = vcmp.lt.s32.totalorder %v127, 0
    %v129 = vsub.s32 0, %v127
    %v130 = vsel %vm128, %v129, %v127
    %v131 = vclz %v130
    %v132 = vsub.s32 %v131, 2
    %vm133 = vcmp.gt.s32.totalorder 0, %v132
    %v134 = vsel %vm133, 0, %v132
    %v135 = vsub.s32 32, %v134
    %v136 = vshll.u32 %v127, %v134
    %v137 = vshrl.u32 %v119, %v135
    %v138 = vor.u32 %v136, %v137
    %v139 = vsub.s32 4294967266, %v134
    %v140 = vadd.s32 %v139, 127
    %v141 = vshll.u32 %v140, 23
    %v142 = vor.u32 4788187, %v141
    %v143 = vand.u32 2147483647, %v142
    %v145 = vcvt.s32.f32 %v138
    %v146 = vmul.f32 %v145, %v143
    %v147 = vxor.u32 %v146, 2147483648
    %v148 = vsel %vm65, %v147, %v146
    %v149 = vsub.s32 4, %v125
    %v150 = vsel %vm65, %v149, %v125
    %v151 = vsel %vm64, %v62, %v148
    %v152 = vsel %vm64, 0, %v150
    %v153 = vcosq.f32.pop %v151
    %v154 = vsinq.f32.pop %v151
    %vm155 = vweird.f32 %v62
    %v156 = vand.u32 %v152, 3
    %vm157 = vcmp.lt.s32.totalorder %v156, 2
    %vm158 = vcmp.eq.s32.totalorder %v156, 0
    %v159 = vxor.u32 %v154, 2147483648
    %v160 = vsel %vm158, %v153, %v159
    %vm161 = vcmp.eq.s32.totalorder %v156, 2
    %v162 = vxor.u32 %v153, 2147483648
    %v163 = vsel %vm161, %v162, %v154
    %v164 = vsel %vm157, %v160, %v163
    %v165 = vsel %vm155, nan, %v164
    %v166 = vand.u32 2147483647, %v62
    %vm167 = vcmp.le.f32.partialorder %v166, 0.7853982
    %vm168 = vcmp.lt.s32.totalorder %v62, 0
    %v169 = vand.u32 %v62, 2139095040
    %v170 = vshrl.u32 %v169, 23
    %v171 = vsub.s32 %v170, 127
    %v172 = vand.u32 2147483647, %v62
    %v173 = vand.u32 %v172, 8388607
    %v174 = vor.u32 %v173, 8388608
    %v175 = vsub.s32 0, %v174
    %v176 = vadd.s32 %v171, 1
    %vm177 = vcmp.gt.s32.totalorder %v176, 0
    %v178 = vsel %vm177, %v176, 0
    %v179 = vshrl.u32 %v178, 5
    %v180 = vand.u32 %v178, 31
    %v181 = vsub.s32 32, %v180
    %v182 = vshrl.u32 683565275, %v181
    %v183 = vshll.u32 683565275, %v180
    %v184 = vshrl.u32 2475754826, %v181
    %v185 = vor.u32 %v183, %v184
    %v186 = vshll.u32 2475754826, %v180
    %v187 = vshrl.u32 2131351028, %v181
    %v188 = vor.u32 %v186, %v187
    %v189 = vshll.u32 2131351028, %v180
    %v190 = vshrl.u32 2102212464, %v181
    %v191 = vor.u32 %v189, %v190
    %v192 = vshll.u32 2102212464, %v180
    %v193 = vshrl.u32 920167782, %v181
    %v194 = vor.u32 %v192, %v193
    %v195 = vshll.u32 920167782, %v180
    %v196 = vshrl.u32 1326507024, %v181
    %v197 = vor.u32 %v195, %v196
    %vm198 = vcmp.lt.s32.totalorder %v179, 1
    %vm199 = vcmp.lt.s32.totalorder %v179, 2
    %vm200 = vcmp.lt.s32.totalorder %v179, 3
    %vm201 = vcmp.lt.s32.totalorder %v179, 4
    %v202 = vsel %vm198, %v182, %v185
    %v203 = vsel %vm201, %v191, 2102212464
    %v204 = vsel %vm200, %v188, %v203
    %v205 = vsel %vm199, %v202, %v204
    %v206 = vsel %vm198, %v185, %v188
    %v207 = vsel %vm201, %v194, 920167782
    %v208 = vsel %vm200, %v191, %v207
    %v209 = vsel %vm199, %v206, %v208
    %v210 = vsel %vm198, %v188, %v191
    %v211 = vsel %vm201, %v197, 1326507024
    %v212 = vsel %vm200, %v194, %v211
    %v213 = vsel %vm199, %v210, %v212
    %v214 = vshll.u32 %v174, 8
    %v215 = vmul.u32.u64.compose %v214, %v213
    %v216 = vextract.low.u32 %v215
    %v217 = vextract.high.u32 %v215
    %v218 = vmul.u32.u64.compose %v214, %v209
    %v219 = vextract.low.u32 %v218
    %v220 = vextract.high.u32 %v218
    %v221 = vmul.u32 %v214, %v205
    %v222 = vadd.s32 %v217, %v219
    %vm223 = vc.u32 %v217, %v219
    %v224 = vadd.s32 %v220, 1
    %v225 = vsel %vm223, %v224, %v220
    %v226 = vadd.s32 %v221, %v225
    %v227 = vadd.s32 %v226, 536870912
    %v228 = vshrl.u32 %v227, 30
    %v229 = vshll.u32 %v228, 30
    %v230 = vsub.s32 %v226, %v229
    %vm231 = vcmp.lt.s32.totalorder %v230, 0
    %v232 = vsub.s32 0, %v230
    %v233 = vsel %vm231, %v232, %v230
    %v234 = vclz %v233
    %v235 = vsub.s32 %v234, 2
    %vm236 = vcmp.gt.s32.totalorder 0, %v235
    %v237 = vsel %vm236, 0, %v235
    %v238 = vsub.s32 32, %v237
    %v239 = vshll.u32 %v230, %v237
    %v240 = vshrl.u32 %v222, %v238
    %v241 = vor.u32 %v239, %v240
    %v242 = vsub.s32 4294967266, %v237
    %v243 = vadd.s32 %v242, 127
    %v244 = vshll.u32 %v243, 23
    %v245 = vor.u32 4788187, %v244
    %v246 = vand.u32 2147483647, %v245
    %v248 = vcvt.s32.f32 %v241
    %v249 = vmul.f32 %v248, %v246
    %v250 = vxor.u32 %v249, 2147483648
    %v251 = vsel %vm168, %v250, %v249
    %v252 = vsub.s32 4, %v228
    %v253 = vsel %vm168, %v252, %v228
    %v254 = vsel %vm167, %v62, %v251
    %v255 = vsel %vm167, 0, %v253
    %v256 = vcosq.f32.pop %v254
    %v257 = vsinq.f32.pop %v254
    %vm258 = vweird.f32 %v62
    %v259 = vadd.s32 %v255, 3
    %v260 = vand.u32 %v259, 3
    %vm261 = vcmp.lt.s32.totalorder %v260, 2
    %vm262 = vcmp.eq.s32.totalorder %v260, 0
    %v263 = vxor.u32 %v257, 2147483648
    %v264 = vsel %vm262, %v256, %v263
    %vm265 = vcmp.eq.s32.totalorder %v260, 2
    %v266 = vxor.u32 %v256, 2147483648
    %v267 = vsel %vm265, %v266, %v257
    %v268 = vsel %vm261, %v264, %v267
    %v269 = vsel %vm258, nan, %v268
    %v270 = vpack.c.bf16 %v165, %v165
    %v271 = vpack.c.bf16 %v269, %v269
    %v272 = vld [vmem:[#allocation2] sm:$0xf]
    %v273 = vld [vmem:[#allocation2 + $0x4] sm:$0xf]
    %v274 = vld [vmem:[#allocation2 + $0x8] sm:$0xf]
    %v275 = vld [vmem:[#allocation2 + $0xc] sm:$0xf]
    %v276 = vld [vmem:[#allocation2 + $0x10] sm:$0xf]
    %v277 = vld [vmem:[#allocation2 + $0x14] sm:$0xf]
    %v278 = vld [vmem:[#allocation2 + $0x18] sm:$0xf]
    %v279 = vld [vmem:[#allocation2 + $0x1c] sm:$0xf]
    %v280 = vld [vmem:[#allocation2 + $0x20] sm:$0xf]
    %v281 = vld [vmem:[#allocation2 + $0x24] sm:$0xf]
    %v282 = vld [vmem:[#allocation2 + $0x28] sm:$0xf]
    %v283 = vld [vmem:[#allocation2 + $0x2c] sm:$0xf]
    %v284 = vld [vmem:[#allocation2 + $0x30] sm:$0xf]
    %v285 = vld [vmem:[#allocation2 + $0x34] sm:$0xf]
    %v286 = vld [vmem:[#allocation2 + $0x38] sm:$0xf]
    %v287 = vld [vmem:[#allocation2 + $0x3c] sm:$0xf]
    %v288 = vld [vmem:[#allocation2 + $0x40] sm:$0xf]
    %v289 = vld [vmem:[#allocation2 + $0x44] sm:$0xf]
    %v290 = vld [vmem:[#allocation2 + $0x48] sm:$0xf]
    %v291 = vld [vmem:[#allocation2 + $0x4c] sm:$0xf]
    %v292 = vld [vmem:[#allocation2 + $0x50] sm:$0xf]
    %v293 = vld [vmem:[#allocation2 + $0x54] sm:$0xf]
    %v294 = vld [vmem:[#allocation2 + $0x58] sm:$0xf]
    %v295 = vld [vmem:[#allocation2 + $0x5c] sm:$0xf]
    %v296 = vld [vmem:[#allocation2 + $0x60] sm:$0xf]
    %v297 = vld [vmem:[#allocation2 + $0x64] sm:$0xf]
    %v298 = vld [vmem:[#allocation2 + $0x68] sm:$0xf]
    %v299 = vld [vmem:[#allocation2 + $0x6c] sm:$0xf]
    %v300 = vld [vmem:[#allocation2 + $0x70] sm:$0xf]
    %v301 = vld [vmem:[#allocation2 + $0x74] sm:$0xf]
    %v302 = vld [vmem:[#allocation2 + $0x78] sm:$0xf]
    %v303 = vld [vmem:[#allocation2 + $0x7c] sm:$0xf]
    %v304 = vld [vmem:[%s2] sm:$0x1]
    %v305 = vunpack.c.l.bf16 %v304
    %v306 = vlaneseq
    %v307 = vshrl.u32 %v306, 7
    %v308 = vsub.s32 0, %v307
    %v309 = vrot.slane %v305, %v308
    %v342 = vunpack.c.l.b16 %v272
    %v343 = vunpack.c.l.b16 %v273
    %v344 = vunpack.c.l.b16 %v274
    %v345 = vunpack.c.l.b16 %v275
    %v346 = vunpack.c.l.b16 %v276
    %v347 = vunpack.c.l.b16 %v277
    %v348 = vunpack.c.l.b16 %v278
    %v349 = vunpack.c.l.b16 %v279
    %v350 = vunpack.c.l.b16 %v280
    %v351 = vunpack.c.l.b16 %v281
    %v352 = vunpack.c.l.b16 %v282
    %v353 = vunpack.c.l.b16 %v283
    %v354 = vunpack.c.l.b16 %v284
    %v355 = vunpack.c.l.b16 %v285
    %v356 = vunpack.c.l.b16 %v286
    %v357 = vunpack.c.l.b16 %v287
    %v358 = vunpack.c.l.b16 %v288
    %v359 = vunpack.c.l.b16 %v289
    %v360 = vunpack.c.l.b16 %v290
    %v361 = vunpack.c.l.b16 %v291
    %v362 = vunpack.c.l.b16 %v292
    %v363 = vunpack.c.l.b16 %v293
    %v364 = vunpack.c.l.b16 %v294
    %v365 = vunpack.c.l.b16 %v295
    %v366 = vunpack.c.l.b16 %v296
    %v367 = vunpack.c.l.b16 %v297
    %v368 = vunpack.c.l.b16 %v298
    %v369 = vunpack.c.l.b16 %v299
    %v370 = vunpack.c.l.b16 %v300
    %v371 = vunpack.c.l.b16 %v301
    %v372 = vunpack.c.l.b16 %v302
    %v373 = vunpack.c.l.b16 %v303
    %v374 = vpack.c.b16 %v343, %v342
    %v375 = vpack.c.b16 %v345, %v344
    %v376 = vpack.c.b16 %v347, %v346
    %v377 = vpack.c.b16 %v349, %v348
    %v378 = vpack.c.b16 %v351, %v350
    %v379 = vpack.c.b16 %v353, %v352
    %v380 = vpack.c.b16 %v355, %v354
    %v381 = vpack.c.b16 %v357, %v356
    %v382 = vpack.c.b16 %v359, %v358
    %v383 = vpack.c.b16 %v361, %v360
    %v384 = vpack.c.b16 %v363, %v362
    %v385 = vpack.c.b16 %v365, %v364
    %v386 = vpack.c.b16 %v367, %v366
    %v387 = vpack.c.b16 %v369, %v368
    %v388 = vpack.c.b16 %v371, %v370
    %v389 = vpack.c.b16 %v373, %v372
    %406 = vmatprep.subr.bf16.mxu0 0
    %407 = vmatpush1.bf16.msra.mxu0 %v381
    %408 = vmatprep.subr.bf16.mxu0 0
    %409 = vmatpush1.bf16.msra.mxu0 %v380
    %410 = vmatprep.subr.bf16.mxu0 0
    %411 = vmatpush1.bf16.msra.mxu0 %v379
    %412 = vmatprep.subr.bf16.mxu0 0
    %413 = vmatpush1.bf16.msra.mxu0 %v378
    %414 = vmatprep.subr.bf16.mxu0 0
    %415 = vmatpush1.bf16.msra.mxu0 %v377
    %416 = vmatprep.subr.bf16.mxu0 0
    %417 = vmatpush1.bf16.msra.mxu0 %v376
    %418 = vmatprep.subr.bf16.mxu0 0
    %419 = vmatpush1.bf16.msra.mxu0 %v375
    %420 = vmatprep.subr.bf16.mxu0 0
    %421 = vmatpush1.bf16.msra.mxu0 %v374
    %422 = vmatprep.subr.bf16.mxu0 0
    %423 = vmatpush2.bf16.msra.mxu0 %v389
    %424 = vmatprep.subr.bf16.mxu0 0
    %425 = vmatpush2.bf16.msra.mxu0 %v388
    %426 = vmatprep.subr.bf16.mxu0 0
    %427 = vmatpush2.bf16.msra.mxu0 %v387
    %428 = vmatprep.subr.bf16.mxu0 0
    %429 = vmatpush2.bf16.msra.mxu0 %v386
    %430 = vmatprep.subr.bf16.mxu0 0
    %431 = vmatpush2.bf16.msra.mxu0 %v385
    %432 = vmatprep.subr.bf16.mxu0 0
    %433 = vmatpush2.bf16.msra.mxu0 %v384
    %434 = vmatprep.subr.bf16.mxu0 0
    %435 = vmatpush2.bf16.msra.mxu0 %v383
    %436 = vmatprep.subr.bf16.mxu0 0
    %437 = vmatpush2.bf16.msra.mxu0 %v382
    %438 = vmatprep.mubr.bf16.mxu0 %v271
    %439 = vmatmul.mubr.bf16.gmra.mxu0 %v270
    %v440 = vpop.f32.mrf.mxu0
    %v441 = vadd.f32 %v309, %v440
    %v442 = vpop.f32.mrf.mxu0
    %v443 = vpop.f32.mrf.mxu0
    %v444 = vpop.f32.mrf.mxu0
    %445 = vdwg.mxu0
    %v446 = vsub.f32 0.0, %v441
    %v447 = vmul.f32 %v446, 1.442695
    %v448 = vpow.pop %v447
    %v449 = vadd.f32 %v448, 1.0
    %v450 = vrcp.pop %v449
    %v451 = vmul.f32 %v441, %v450
    %v452 = vpack.c.bf16 %v451, %v451
    %v453 = vld [vmem:[#allocation5] sm:$0xf]
    %v454 = vld [vmem:[#allocation5 + $0x4] sm:$0xf]
    %v455 = vld [vmem:[#allocation5 + $0x8] sm:$0xf]
    %v456 = vld [vmem:[#allocation5 + $0xc] sm:$0xf]
    %v457 = vld [vmem:[#allocation5 + $0x10] sm:$0xf]
    %v458 = vld [vmem:[#allocation5 + $0x14] sm:$0xf]
    %v459 = vld [vmem:[#allocation5 + $0x18] sm:$0xf]
    %v460 = vld [vmem:[#allocation5 + $0x1c] sm:$0xf]
    %v461 = vld [vmem:[#allocation5 + $0x20] sm:$0xf]
    %v462 = vld [vmem:[#allocation5 + $0x24] sm:$0xf]
    %v463 = vld [vmem:[#allocation5 + $0x28] sm:$0xf]
    %v464 = vld [vmem:[#allocation5 + $0x2c] sm:$0xf]
    %v465 = vld [vmem:[#allocation5 + $0x30] sm:$0xf]
    %v466 = vld [vmem:[#allocation5 + $0x34] sm:$0xf]
    %v467 = vld [vmem:[#allocation5 + $0x38] sm:$0xf]
    %v468 = vld [vmem:[#allocation5 + $0x3c] sm:$0xf]
    %v469 = vld [vmem:[%s4] sm:$0x1]
    %v470 = vunpack.c.l.bf16 %v469
    %v471 = vlaneseq
    %v472 = vshrl.u32 %v471, 7
    %v473 = vsub.s32 0, %v472
    %v474 = vrot.slane %v470, %v473
    %v491 = vunpack.c.l.b16 %v453
    %v492 = vunpack.c.l.b16 %v454
    %v493 = vunpack.c.l.b16 %v455
    %v494 = vunpack.c.l.b16 %v456
    %v495 = vunpack.c.l.b16 %v457
    %v496 = vunpack.c.l.b16 %v458
    %v497 = vunpack.c.l.b16 %v459
    %v498 = vunpack.c.l.b16 %v460
    %v499 = vunpack.c.l.b16 %v461
    %v500 = vunpack.c.l.b16 %v462
    %v501 = vunpack.c.l.b16 %v463
    %v502 = vunpack.c.l.b16 %v464
    %v503 = vunpack.c.l.b16 %v465
    %v504 = vunpack.c.l.b16 %v466
    %v505 = vunpack.c.l.b16 %v467
    %v506 = vunpack.c.l.b16 %v468
    %v507 = vpack.c.b16 %v492, %v491
    %v508 = vpack.c.b16 %v494, %v493
    %v509 = vpack.c.b16 %v496, %v495
    %v510 = vpack.c.b16 %v498, %v497
    %v511 = vpack.c.b16 %v500, %v499
    %v512 = vpack.c.b16 %v502, %v501
    %v513 = vpack.c.b16 %v504, %v503
    %v514 = vpack.c.b16 %v506, %v505
    %523 = vmatprep.subr.bf16.mxu0 0
    %524 = vmatpush1.bf16.msra.mxu0 %v514
    %525 = vmatprep.subr.bf16.mxu0 0
    %526 = vmatpush1.bf16.msra.mxu0 %v513
    %527 = vmatprep.subr.bf16.mxu0 0
    %528 = vmatpush1.bf16.msra.mxu0 %v512
    %529 = vmatprep.subr.bf16.mxu0 0
    %530 = vmatpush1.bf16.msra.mxu0 %v511
    %531 = vmatprep.subr.bf16.mxu0 0
    %532 = vmatpush1.bf16.msra.mxu0 %v510
    %533 = vmatprep.subr.bf16.mxu0 0
    %534 = vmatpush1.bf16.msra.mxu0 %v509
    %535 = vmatprep.subr.bf16.mxu0 0
    %536 = vmatpush1.bf16.msra.mxu0 %v508
    %537 = vmatprep.subr.bf16.mxu0 0
    %538 = vmatpush1.bf16.msra.mxu0 %v507
    %539 = vmatprep.subr.bf16.mxu0 0
    %540 = vmatpush2.bf16.msra.mxu0 0
    %541 = vmatprep.subr.bf16.mxu0 0
    %542 = vmatpush2.bf16.msra.mxu0 0
    %543 = vmatprep.subr.bf16.mxu0 0
    %544 = vmatpush2.bf16.msra.mxu0 0
    %545 = vmatprep.subr.bf16.mxu0 0
    %546 = vmatpush2.bf16.msra.mxu0 0
    %547 = vmatprep.subr.bf16.mxu0 0
    %548 = vmatpush2.bf16.msra.mxu0 0
    %549 = vmatprep.subr.bf16.mxu0 0
    %550 = vmatpush2.bf16.msra.mxu0 0
    %551 = vmatprep.subr.bf16.mxu0 0
    %552 = vmatpush2.bf16.msra.mxu0 0
    %553 = vmatprep.subr.bf16.mxu0 0
    %554 = vmatpush2.bf16.msra.mxu0 0
    %555 = vmatprep.mubr.bf16.mxu0 0
    %556 = vmatmul.mubr.bf16.gmra.mxu0 %v452
    %v557 = vpop.f32.mrf.mxu0
    %v558 = vadd.f32 %v474, %v557
    %v559 = vpop.f32.mrf.mxu0
    %v560 = vpop.f32.mrf.mxu0
    %v561 = vpop.f32.mrf.mxu0
    %562 = vdwg.mxu0
    %v563 = vpack.c.bf16 %v558, %v558
    %564 = vst [vmem:[#allocation7] sm:$0xf] %v563
    // Predicated region
    $region30: #{tpu_custom_call.1} parent=1 // pred_check
      _
    $region31: #{tpu_custom_call.1} parent=1 // pred_check_branch
      %566 = sbr.rel (0) target = $region33
    $region32: #{tpu_custom_call.1} parent=1 // pred_region
      %s568 = ssub.s32 64, 64
      %569 = vsyncadd [#allocation4], %s568
      %s571 = sshll.u32 [#allocation7], 4
      %s572 = int_to_ptr.vmem [resolvable:$true] %s571
      %574 = dma.vmem_to_hbm [thread:$0]  %s572, 64, %s5, [#allocation4]
    $region33: #{tpu_custom_call.1} parent=1 // pred_fallthru
      _
    // Predicated region
    $region34: #{tpu_custom_call.1} parent=1 // pred_check
      _
    $region35: #{tpu_custom_call.1} parent=1 // pred_check_branch
      %576 = sbr.rel (0) target = $region37
    $region36: #{tpu_custom_call.1} parent=1 // pred_region
      %577 = dma.done [#allocation4], 64
    $region37: #{tpu_custom_call.1} parent=1 // pred_fallthru
      _
    %578 = vsyncpa [#allocation3], 1
    %579 = vsyncpa [#allocation6], 1
    %580 = vsyncpa [#allocation4], 1

// kernel: tpu_custom_call.1
$region0: #{tpu_custom_call.1}
  #allocation0 [shape = 'u32[]', space=smem, size = 0x4, offset = 0x4, fixed_abs, tag = 'smem constant byte address 0x4 - core index']
  #allocation1 [shape = 'u32[144,128]{1,0:T(1,128)}', space=vmem, size = 0x12000, scoped, tag = 'internal scratch']
  %s0 = inlined_call_operand.vmem [shape: f32[8,1], index: 0, kind: input, shape index: {}]
  %s1 = inlined_call_operand.hbm [shape: bf16[256,128], index: 1, kind: input, shape index: {}]
  %s2 = inlined_call_operand.vmem [shape: bf16[1,128], index: 2, kind: input, shape index: {}]
  %s3 = inlined_call_operand.hbm [shape: bf16[128,128], index: 3, kind: input, shape index: {}]
  %s4 = inlined_call_operand.vmem [shape: bf16[1,128], index: 4, kind: input, shape index: {}]
  %s5 = inlined_call_operand.hbm [shape: bf16[8,128], index: 5, kind: output, shape index: {}]
  %s6 = sld [smem:[#allocation0]]
  $region38: #{tpu_custom_call.1} parent=0
    _
  %s8 = ssub.s32 1, %s6
  %s9 = scalar_select 0, %s8, %s6
  $region1: #{tpu_custom_call.1} parent=0
    #allocation2 [shape = 'u8[65536]{0}', space=vmem, size = 0x10000, scoped, tag = 'input window, operand 1, single buffered']
    #allocation3 [shape = 's32[1]{0}', space=sflag, size = 0x4, scoped, tag = 'scoped memory for tpu_custom_call.1']
    #allocation4 [shape = 's32[1]{0}', space=sflag, size = 0x4, scoped, tag = 'scoped memory for tpu_custom_call.1']
    #allocation5 [shape = 'u8[32768]{0}', space=vmem, size = 0x8000, scoped, tag = 'input window, operand 3, single buffered']
    #allocation6 [shape = 's32[1]{0}', space=sflag, size = 0x4, scoped, tag = 'scoped memory for tpu_custom_call.1']
    #allocation7 [shape = 'u8[2048]{0}', space=vmem, size = 0x800, scoped, tag = 'output window, operand 0, single buffered']
    %10 = vsyncpa [#allocation3], 0
    %11 = vsyncpa [#allocation6], 0
    %12 = vsyncpa [#allocation4], 0
    // Predicated region
    $region2: #{tpu_custom_call.1} parent=1 // pred_check
      _
    $region3: #{tpu_custom_call.1} parent=1 // pred_check_branch
      %14 = sbr.rel (0) target = $region5
    $region4: #{tpu_custom_call.1} parent=1 // pred_region
      _
    $region5: #{tpu_custom_call.1} parent=1 // pred_fallthru
      _
    // Predicated region
    $region6: #{tpu_custom_call.1} parent=1 // pred_check
      _
    $region7: #{tpu_custom_call.1} parent=1 // pred_check_branch
      %16 = sbr.rel (0) target = $region9
    $region8: #{tpu_custom_call.1} parent=1 // pred_region
      %s18 = ssub.s32 2048, 2048
      %19 = vsyncadd [#allocation3], %s18
      %s20 = sshll.u32 [#allocation2], 4
      %s21 = int_to_ptr.vmem [resolvable:$true] %s20
      %26 = dma.hbm_to_vmem [thread:$0]  %s1, 2048, %s21, [#allocation3], 64, 64, 4
    $region9: #{tpu_custom_call.1} parent=1 // pred_fallthru
      _
    // Predicated region
    $region10: #{tpu_custom_call.1} parent=1 // pred_check
      _
    $region11: #{tpu_custom_call.1} parent=1 // pred_check_branch
      %28 = sbr.rel (0) target = $region13
    $region12: #{tpu_custom_call.1} parent=1 // pred_region
      _
    $region13: #{tpu_custom_call.1} parent=1 // pred_fallthru
      _
    // Predicated region
    $region14: #{tpu_custom_call.1} parent=1 // pred_check
      _
    $region15: #{tpu_custom_call.1} parent=1 // pred_check_branch
      %30 = sbr.rel (0) target = $region17
    $region16: #{tpu_custom_call.1} parent=1 // pred_region
      %s32 = ssub.s32 1024, 1024
      %33 = vsyncadd [#allocation6], %s32
      %s34 = sshll.u32 [#allocation5], 4
      %s35 = int_to_ptr.vmem [resolvable:$true] %s34
      %40 = dma.hbm_to_vmem [thread:$0]  %s3, 1024, %s35, [#allocation6], 64, 64, 4
    $region17: #{tpu_custom_call.1} parent=1 // pred_fallthru
      _
    // Predicated region
    $region18: #{tpu_custom_call.1} parent=1 // pred_check
      _
    $region19: #{tpu_custom_call.1} parent=1 // pred_check_branch
      %42 = sbr.rel (0) target = $region21
    $region20: #{tpu_custom_call.1} parent=1 // pred_region
      _
    $region21: #{tpu_custom_call.1} parent=1 // pred_fallthru
      _
    // Predicated region
    $region22: #{tpu_custom_call.1} parent=1 // pred_check
      _
    $region23: #{tpu_custom_call.1} parent=1 // pred_check_branch
      %44 = sbr.rel (0) target = $region25
    $region24: #{tpu_custom_call.1} parent=1 // pred_region
      %45 = dma.done [#allocation3], 2048
    $region25: #{tpu_custom_call.1} parent=1 // pred_fallthru
      _
    // Predicated region
    $region26: #{tpu_custom_call.1} parent=1 // pred_check
      _
    $region27: #{tpu_custom_call.1} parent=1 // pred_check_branch
      %47 = sbr.rel (0) target = $region29
    $region28: #{tpu_custom_call.1} parent=1 // pred_region
      %48 = dma.done [#allocation6], 1024
    $region29: #{tpu_custom_call.1} parent=1 // pred_fallthru
      _
    %v50 = vlaneseq
    %v51 = vand.u32 %v50, 127
    %v52 = vcvt.s32.f32 %v51
    %v53 = vmul.f32 %v52, -0.071955785
    %v54 = vmul.f32 %v53, 1.442695
    %v55 = vpow.pop %v54
    %v56 = vld [vmem:[%s0] sm:$0xff]
    %58 = vset.pattern.permute.xlu0 0
    %59 = vperm.xlu0 %58, %v56
    %v60 = vpop.permute.xlu0 %59
    %v62 = vmul.f32 %v60, %v55
    %v63 = vand.u32 2147483647, %v62
    %vm64 = vcmp.le.f32.partialorder %v63, 0.7853982
    %vm65 = vcmp.lt.s32.totalorder %v62, 0
    %v66 = vand.u32 %v62, 2139095040
    %v67 = vshrl.u32 %v66, 23
    %v68 = vsub.s32 %v67, 127
    %v69 = vand.u32 2147483647, %v62
    %v70 = vand.u32 %v69, 8388607
    %v71 = vor.u32 %v70, 8388608
    %v72 = vsub.s32 0, %v71
    %v73 = vadd.s32 %v68, 1
    %vm74 = vcmp.gt.s32.totalorder %v73, 0
    %v75 = vsel %vm74, %v73, 0
    %v76 = vshrl.u32 %v75, 5
    %v77 = vand.u32 %v75, 31
    %v78 = vsub.s32 32, %v77
    %v79 = vshrl.u32 683565275, %v78
    %v80 = vshll.u32 683565275, %v77
    %v81 = vshrl.u32 2475754826, %v78
    %v82 = vor.u32 %v80, %v81
    %v83 = vshll.u32 2475754826, %v77
    %v84 = vshrl.u32 2131351028, %v78
    %v85 = vor.u32 %v83, %v84
    %v86 = vshll.u32 2131351028, %v77
    %v87 = vshrl.u32 2102212464, %v78
    %v88 = vor.u32 %v86, %v87
    %v89 = vshll.u32 2102212464, %v77
    %v90 = vshrl.u32 920167782, %v78
    %v91 = vor.u32 %v89, %v90
    %v92 = vshll.u32 920167782, %v77
    %v93 = vshrl.u32 1326507024, %v78
    %v94 = vor.u32 %v92, %v93
    %vm95 = vcmp.lt.s32.totalorder %v76, 1
    %vm96 = vcmp.lt.s32.totalorder %v76, 2
    %vm97 = vcmp.lt.s32.totalorder %v76, 3
    %vm98 = vcmp.lt.s32.totalorder %v76, 4
    %v99 = vsel %vm95, %v79, %v82
    %v100 = vsel %vm98, %v88, 2102212464
    %v101 = vsel %vm97, %v85, %v100
    %v102 = vsel %vm96, %v99, %v101
    %v103 = vsel %vm95, %v82, %v85
    %v104 = vsel %vm98, %v91, 920167782
    %v105 = vsel %vm97, %v88, %v104
    %v106 = vsel %vm96, %v103, %v105
    %v107 = vsel %vm95, %v85, %v88
    %v108 = vsel %vm98, %v94, 1326507024
    %v109 = vsel %vm97, %v91, %v108
    %v110 = vsel %vm96, %v107, %v109
    %v111 = vshll.u32 %v71, 8
    %v112 = vmul.u32.u64.compose %v111, %v110
    %v113 = vextract.low.u32 %v112
    %v114 = vextract.high.u32 %v112
    %v115 = vmul.u32.u64.compose %v111, %v106
    %v116 = vextract.low.u32 %v115
    %v117 = vextract.high.u32 %v115
    %v118 = vmul.u32 %v111, %v102
    %v119 = vadd.s32 %v114, %v116
    %vm120 = vc.u32 %v114, %v116
    %v121 = vadd.s32 %v117, 1
    %v122 = vsel %vm120, %v121, %v117
    %v123 = vadd.s32 %v118, %v122
    %v124 = vadd.s32 %v123, 536870912
    %v125 = vshrl.u32 %v124, 30
    %v126 = vshll.u32 %v125, 30
    %v127 = vsub.s32 %v123, %v126
    %vm128 = vcmp.lt.s32.totalorder %v127, 0
    %v129 = vsub.s32 0, %v127
    %v130 = vsel %vm128, %v129, %v127
    %v131 = vclz %v130
    %v132 = vsub.s32 %v131, 2
    %vm133 = vcmp.gt.s32.totalorder 0, %v132
    %v134 = vsel %vm133, 0, %v132
    %v135 = vsub.s32 32, %v134
    %v136 = vshll.u32 %v127, %v134
    %v137 = vshrl.u32 %v119, %v135
    %v138 = vor.u32 %v136, %v137
    %v139 = vsub.s32 4294967266, %v134
    %v140 = vadd.s32 %v139, 127
    %v141 = vshll.u32 %v140, 23
    %v142 = vor.u32 4788187, %v141
    %v143 = vand.u32 2147483647, %v142
    %v145 = vcvt.s32.f32 %v138
    %v146 = vmul.f32 %v145, %v143
    %v147 = vxor.u32 %v146, 2147483648
    %v148 = vsel %vm65, %v147, %v146
    %v149 = vsub.s32 4, %v125
    %v150 = vsel %vm65, %v149, %v125
    %v151 = vsel %vm64, %v62, %v148
    %v152 = vsel %vm64, 0, %v150
    %v153 = vcosq.f32.pop %v151
    %v154 = vsinq.f32.pop %v151
    %vm155 = vweird.f32 %v62
    %v156 = vand.u32 %v152, 3
    %vm157 = vcmp.lt.s32.totalorder %v156, 2
    %vm158 = vcmp.eq.s32.totalorder %v156, 0
    %v159 = vxor.u32 %v154, 2147483648
    %v160 = vsel %vm158, %v153, %v159
    %vm161 = vcmp.eq.s32.totalorder %v156, 2
    %v162 = vxor.u32 %v153, 2147483648
    %v163 = vsel %vm161, %v162, %v154
    %v164 = vsel %vm157, %v160, %v163
    %v165 = vsel %vm155, nan, %v164
    %v166 = vand.u32 2147483647, %v62
    %vm167 = vcmp.le.f32.partialorder %v166, 0.7853982
    %vm168 = vcmp.lt.s32.totalorder %v62, 0
    %v169 = vand.u32 %v62, 2139095040
    %v170 = vshrl.u32 %v169, 23
    %v171 = vsub.s32 %v170, 127
    %v172 = vand.u32 2147483647, %v62
    %v173 = vand.u32 %v172, 8388607
    %v174 = vor.u32 %v173, 8388608
    %v175 = vsub.s32 0, %v174
    %v176 = vadd.s32 %v171, 1
    %vm177 = vcmp.gt.s32.totalorder %v176, 0
    %v178 = vsel %vm177, %v176, 0
    %v179 = vshrl.u32 %v178, 5
    %v180 = vand.u32 %v178, 31
    %v181 = vsub.s32 32, %v180
    %v182 = vshrl.u32 683565275, %v181
    %v183 = vshll.u32 683565275, %v180
    %v184 = vshrl.u32 2475754826, %v181
    %v185 = vor.u32 %v183, %v184
    %v186 = vshll.u32 2475754826, %v180
    %v187 = vshrl.u32 2131351028, %v181
    %v188 = vor.u32 %v186, %v187
    %v189 = vshll.u32 2131351028, %v180
    %v190 = vshrl.u32 2102212464, %v181
    %v191 = vor.u32 %v189, %v190
    %v192 = vshll.u32 2102212464, %v180
    %v193 = vshrl.u32 920167782, %v181
    %v194 = vor.u32 %v192, %v193
    %v195 = vshll.u32 920167782, %v180
    %v196 = vshrl.u32 1326507024, %v181
    %v197 = vor.u32 %v195, %v196
    %vm198 = vcmp.lt.s32.totalorder %v179, 1
    %vm199 = vcmp.lt.s32.totalorder %v179, 2
    %vm200 = vcmp.lt.s32.totalorder %v179, 3
    %vm201 = vcmp.lt.s32.totalorder %v179, 4
    %v202 = vsel %vm198, %v182, %v185
    %v203 = vsel %vm201, %v191, 2102212464
    %v204 = vsel %vm200, %v188, %v203
    %v205 = vsel %vm199, %v202, %v204
    %v206 = vsel %vm198, %v185, %v188
    %v207 = vsel %vm201, %v194, 920167782
    %v208 = vsel %vm200, %v191, %v207
    %v209 = vsel %vm199, %v206, %v208
    %v210 = vsel %vm198, %v188, %v191
    %v211 = vsel %vm201, %v197, 1326507024
    %v212 = vsel %vm200, %v194, %v211
    %v213 = vsel %vm199, %v210, %v212
    %v214 = vshll.u32 %v174, 8
    %v215 = vmul.u32.u64.compose %v214, %v213
    %v216 = vextract.low.u32 %v215
    %v217 = vextract.high.u32 %v215
    %v218 = vmul.u32.u64.compose %v214, %v209
    %v219 = vextract.low.u32 %v218
    %v220 = vextract.high.u32 %v218
    %v221 = vmul.u32 %v214, %v205
    %v222 = vadd.s32 %v217, %v219
    %vm223 = vc.u32 %v217, %v219
    %v224 = vadd.s32 %v220, 1
    %v225 = vsel %vm223, %v224, %v220
    %v226 = vadd.s32 %v221, %v225
    %v227 = vadd.s32 %v226, 536870912
    %v228 = vshrl.u32 %v227, 30
    %v229 = vshll.u32 %v228, 30
    %v230 = vsub.s32 %v226, %v229
    %vm231 = vcmp.lt.s32.totalorder %v230, 0
    %v232 = vsub.s32 0, %v230
    %v233 = vsel %vm231, %v232, %v230
    %v234 = vclz %v233
    %v235 = vsub.s32 %v234, 2
    %vm236 = vcmp.gt.s32.totalorder 0, %v235
    %v237 = vsel %vm236, 0, %v235
    %v238 = vsub.s32 32, %v237
    %v239 = vshll.u32 %v230, %v237
    %v240 = vshrl.u32 %v222, %v238
    %v241 = vor.u32 %v239, %v240
    %v242 = vsub.s32 4294967266, %v237
    %v243 = vadd.s32 %v242, 127
    %v244 = vshll.u32 %v243, 23
    %v245 = vor.u32 4788187, %v244
    %v246 = vand.u32 2147483647, %v245
    %v248 = vcvt.s32.f32 %v241
    %v249 = vmul.f32 %v248, %v246
    %v250 = vxor.u32 %v249, 2147483648
    %v251 = vsel %vm168, %v250, %v249
    %v252 = vsub.s32 4, %v228
    %v253 = vsel %vm168, %v252, %v228
    %v254 = vsel %vm167, %v62, %v251
    %v255 = vsel %vm167, 0, %v253
    %v256 = vcosq.f32.pop %v254
    %v257 = vsinq.f32.pop %v254
    %vm258 = vweird.f32 %v62
    %v259 = vadd.s32 %v255, 3
    %v260 = vand.u32 %v259, 3
    %vm261 = vcmp.lt.s32.totalorder %v260, 2
    %vm262 = vcmp.eq.s32.totalorder %v260, 0
    %v263 = vxor.u32 %v257, 2147483648
    %v264 = vsel %vm262, %v256, %v263
    %vm265 = vcmp.eq.s32.totalorder %v260, 2
    %v266 = vxor.u32 %v256, 2147483648
    %v267 = vsel %vm265, %v266, %v257
    %v268 = vsel %vm261, %v264, %v267
    %v269 = vsel %vm258, nan, %v268
    %v270 = vpack.c.bf16 %v165, %v165
    %v271 = vpack.c.bf16 %v269, %v269
    %v272 = vld [vmem:[#allocation2] sm:$0xf]
    %v273 = vld [vmem:[#allocation2 + $0x4] sm:$0xf]
    %v274 = vld [vmem:[#allocation2 + $0x8] sm:$0xf]
    %v275 = vld [vmem:[#allocation2 + $0xc] sm:$0xf]
    %v276 = vld [vmem:[#allocation2 + $0x10] sm:$0xf]
    %v277 = vld [vmem:[#allocation2 + $0x14] sm:$0xf]
    %v278 = vld [vmem:[#allocation2 + $0x18] sm:$0xf]
    %v279 = vld [vmem:[#allocation2 + $0x1c] sm:$0xf]
    %v280 = vld [vmem:[#allocation2 + $0x20] sm:$0xf]
    %v281 = vld [vmem:[#allocation2 + $0x24] sm:$0xf]
    %v282 = vld [vmem:[#allocation2 + $0x28] sm:$0xf]
    %v283 = vld [vmem:[#allocation2 + $0x2c] sm:$0xf]
    %v284 = vld [vmem:[#allocation2 + $0x30] sm:$0xf]
    %v285 = vld [vmem:[#allocation2 + $0x34] sm:$0xf]
    %v286 = vld [vmem:[#allocation2 + $0x38] sm:$0xf]
    %v287 = vld [vmem:[#allocation2 + $0x3c] sm:$0xf]
    %v288 = vld [vmem:[#allocation2 + $0x40] sm:$0xf]
    %v289 = vld [vmem:[#allocation2 + $0x44] sm:$0xf]
    %v290 = vld [vmem:[#allocation2 + $0x48] sm:$0xf]
    %v291 = vld [vmem:[#allocation2 + $0x4c] sm:$0xf]
    %v292 = vld [vmem:[#allocation2 + $0x50] sm:$0xf]
    %v293 = vld [vmem:[#allocation2 + $0x54] sm:$0xf]
    %v294 = vld [vmem:[#allocation2 + $0x58] sm:$0xf]
    %v295 = vld [vmem:[#allocation2 + $0x5c] sm:$0xf]
    %v296 = vld [vmem:[#allocation2 + $0x60] sm:$0xf]
    %v297 = vld [vmem:[#allocation2 + $0x64] sm:$0xf]
    %v298 = vld [vmem:[#allocation2 + $0x68] sm:$0xf]
    %v299 = vld [vmem:[#allocation2 + $0x6c] sm:$0xf]
    %v300 = vld [vmem:[#allocation2 + $0x70] sm:$0xf]
    %v301 = vld [vmem:[#allocation2 + $0x74] sm:$0xf]
    %v302 = vld [vmem:[#allocation2 + $0x78] sm:$0xf]
    %v303 = vld [vmem:[#allocation2 + $0x7c] sm:$0xf]
    %v304 = vld [vmem:[%s2] sm:$0x1]
    %v305 = vunpack.c.l.bf16 %v304
    %v306 = vlaneseq
    %v307 = vshrl.u32 %v306, 7
    %v308 = vsub.s32 0, %v307
    %v309 = vrot.slane %v305, %v308
    %v342 = vunpack.c.l.b16 %v272
    %v343 = vunpack.c.l.b16 %v273
    %v344 = vunpack.c.l.b16 %v274
    %v345 = vunpack.c.l.b16 %v275
    %v346 = vunpack.c.l.b16 %v276
    %v347 = vunpack.c.l.b16 %v277
    %v348 = vunpack.c.l.b16 %v278
    %v349 = vunpack.c.l.b16 %v279
    %v350 = vunpack.c.l.b16 %v280
    %v351 = vunpack.c.l.b16 %v281
    %v352 = vunpack.c.l.b16 %v282
    %v353 = vunpack.c.l.b16 %v283
    %v354 = vunpack.c.l.b16 %v284
    %v355 = vunpack.c.l.b16 %v285
    %v356 = vunpack.c.l.b16 %v286
    %v357 = vunpack.c.l.b16 %v287
    %v358 = vunpack.c.l.b16 %v288
    %v359 = vunpack.c.l.b16 %v289
    %v360 = vunpack.c.l.b16 %v290
    %v361 = vunpack.c.l.b16 %v291
    %v362 = vunpack.c.l.b16 %v292
    %v363 = vunpack.c.l.b16 %v293
    %v364 = vunpack.c.l.b16 %v294
    %v365 = vunpack.c.l.b16 %v295
    %v366 = vunpack.c.l.b16 %v296
    %v367 = vunpack.c.l.b16 %v297
    %v368 = vunpack.c.l.b16 %v298
    %v369 = vunpack.c.l.b16 %v299
    %v370 = vunpack.c.l.b16 %v300
    %v371 = vunpack.c.l.b16 %v301
    %v372 = vunpack.c.l.b16 %v302
    %v373 = vunpack.c.l.b16 %v303
    %v374 = vpack.c.b16 %v343, %v342
    %v375 = vpack.c.b16 %v345, %v344
    %v376 = vpack.c.b16 %v347, %v346
    %v377 = vpack.c.b16 %v349, %v348
    %v378 = vpack.c.b16 %v351, %v350
    %v379 = vpack.c.b16 %v353, %v352
    %v380 = vpack.c.b16 %v355, %v354
    %v381 = vpack.c.b16 %v357, %v356
    %v382 = vpack.c.b16 %v359, %v358
    %v383 = vpack.c.b16 %v361, %v360
    %v384 = vpack.c.b16 %v363, %v362
    %v385 = vpack.c.b16 %v365, %v364
    %v386 = vpack.c.b16 %v367, %v366
    %v387 = vpack.c.b16 %v369, %v368
    %v388 = vpack.c.b16 %v371, %v370
    %v389 = vpack.c.b16 %v373, %v372
    %406 = vmatprep.subr.bf16.mxu0 0
    %407 = vmatpush1.bf16.msra.mxu0 %v381
    %408 = vmatprep.subr.bf16.mxu0 0
    %409 = vmatpush1.bf16.msra.mxu0 %v380
    %410 = vmatprep.subr.bf16.mxu0 0
    %411 = vmatpush1.bf16.msra.mxu0 %v379
    %412 = vmatprep.subr.bf16.mxu0 0
    %413 = vmatpush1.bf16.msra.mxu0 %v378
    %414 = vmatprep.subr.bf16.mxu0 0
    %415 = vmatpush1.bf16.msra.mxu0 %v377
    %416 = vmatprep.subr.bf16.mxu0 0
    %417 = vmatpush1.bf16.msra.mxu0 %v376
    %418 = vmatprep.subr.bf16.mxu0 0
    %419 = vmatpush1.bf16.msra.mxu0 %v375
    %420 = vmatprep.subr.bf16.mxu0 0
    %421 = vmatpush1.bf16.msra.mxu0 %v374
    %422 = vmatprep.subr.bf16.mxu0 0
    %423 = vmatpush2.bf16.msra.mxu0 %v389
    %424 = vmatprep.subr.bf16.mxu0 0
    %425 = vmatpush2.bf16.msra.mxu0 %v388
    %426 = vmatprep.subr.bf16.mxu0 0
    %427 = vmatpush2.bf16.msra.mxu0 %v387
    %428 = vmatprep.subr.bf16.mxu0 0
    %429 = vmatpush2.bf16.msra.mxu0 %v386
    %430 = vmatprep.subr.bf16.mxu0 0
    %431 = vmatpush2.bf16.msra.mxu0 %v385
    %432 = vmatprep.subr.bf16.mxu0 0
    %433 = vmatpush2.bf16.msra.mxu0 %v384
    %434 = vmatprep.subr.bf16.mxu0 0
    %435 = vmatpush2.bf16.msra.mxu0 %v383
    %436 = vmatprep.subr.bf16.mxu0 0
    %437 = vmatpush2.bf16.msra.mxu0 %v382
    %438 = vmatprep.mubr.bf16.mxu0 %v271
    %439 = vmatmul.mubr.bf16.gmra.mxu0 %v270
    %v440 = vpop.f32.mrf.mxu0
    %v441 = vadd.f32 %v309, %v440
    %v442 = vpop.f32.mrf.mxu0
    %v443 = vpop.f32.mrf.mxu0
    %v444 = vpop.f32.mrf.mxu0
    %445 = vdwg.mxu0
    %v446 = vsub.f32 0.0, %v441
    %v447 = vmul.f32 %v446, 1.442695
    %v448 = vpow.pop %v447
    %v449 = vadd.f32 %v448, 1.0
    %v450 = vrcp.pop %v449
    %v451 = vmul.f32 %v441, %v450
    %v452 = vpack.c.bf16 %v451, %v451
    %v453 = vld [vmem:[#allocation5] sm:$0xf]
    %v454 = vld [vmem:[#allocation5 + $0x4] sm:$0xf]
    %v455 = vld [vmem:[#allocation5 + $0x8] sm:$0xf]
    %v456 = vld [vmem:[#allocation5 + $0xc] sm:$0xf]
    %v457 = vld [vmem:[#allocation5 + $0x10] sm:$0xf]
    %v458 = vld [vmem:[#allocation5 + $0x14] sm:$0xf]
    %v459 = vld [vmem:[#allocation5 + $0x18] sm:$0xf]
    %v460 = vld [vmem:[#allocation5 + $0x1c] sm:$0xf]
    %v461 = vld [vmem:[#allocation5 + $0x20] sm:$0xf]
    %v462 = vld [vmem:[#allocation5 + $0x24] sm:$0xf]
    %v463 = vld [vmem:[#allocation5 + $0x28] sm:$0xf]
    %v464 = vld [vmem:[#allocation5 + $0x2c] sm:$0xf]
    %v465 = vld [vmem:[#allocation5 + $0x30] sm:$0xf]
    %v466 = vld [vmem:[#allocation5 + $0x34] sm:$0xf]
    %v467 = vld [vmem:[#allocation5 + $0x38] sm:$0xf]
    %v468 = vld [vmem:[#allocation5 + $0x3c] sm:$0xf]
    %v469 = vld [vmem:[%s4] sm:$0x1]
    %v470 = vunpack.c.l.bf16 %v469
    %v471 = vlaneseq
    %v472 = vshrl.u32 %v471, 7
    %v473 = vsub.s32 0, %v472
    %v474 = vrot.slane %v470, %v473
    %v491 = vunpack.c.l.b16 %v453
    %v492 = vunpack.c.l.b16 %v454
    %v493 = vunpack.c.l.b16 %v455
    %v494 = vunpack.c.l.b16 %v456
    %v495 = vunpack.c.l.b16 %v457
    %v496 = vunpack.c.l.b16 %v458
    %v497 = vunpack.c.l.b16 %v459
    %v498 = vunpack.c.l.b16 %v460
    %v499 = vunpack.c.l.b16 %v461
    %v500 = vunpack.c.l.b16 %v462
    %v501 = vunpack.c.l.b16 %v463
    %v502 = vunpack.c.l.b16 %v464
    %v503 = vunpack.c.l.b16 %v465
    %v504 = vunpack.c.l.b16 %v466
    %v505 = vunpack.c.l.b16 %v467
    %v506 = vunpack.c.l.b16 %v468
    %v507 = vpack.c.b16 %v492, %v491
    %v508 = vpack.c.b16 %v494, %v493
    %v509 = vpack.c.b16 %v496, %v495
    %v510 = vpack.c.b16 %v498, %v497
    %v511 = vpack.c.b16 %v500, %v499
    %v512 = vpack.c.b16 %v502, %v501
    %v513 = vpack.c.b16 %v504, %v503
    %v514 = vpack.c.b16 %v506, %v505
    %523 = vmatprep.subr.bf16.mxu0 0
    %524 = vmatpush1.bf16.msra.mxu0 %v514
    %525 = vmatprep.subr.bf16.mxu0 0
    %526 = vmatpush1.bf16.msra.mxu0 %v513
    %527 = vmatprep.subr.bf16.mxu0 0
    %528 = vmatpush1.bf16.msra.mxu0 %v512
    %529 = vmatprep.subr.bf16.mxu0 0
    %530 = vmatpush1.bf16.msra.mxu0 %v511
    %531 = vmatprep.subr.bf16.mxu0 0
    %532 = vmatpush1.bf16.msra.mxu0 %v510
    %533 = vmatprep.subr.bf16.mxu0 0
    %534 = vmatpush1.bf16.msra.mxu0 %v509
    %535 = vmatprep.subr.bf16.mxu0 0
    %536 = vmatpush1.bf16.msra.mxu0 %v508
    %537 = vmatprep.subr.bf16.mxu0 0
    %538 = vmatpush1.bf16.msra.mxu0 %v507
    %539 = vmatprep.subr.bf16.mxu0 0
    %540 = vmatpush2.bf16.msra.mxu0 0
    %541 = vmatprep.subr.bf16.mxu0 0
    %542 = vmatpush2.bf16.msra.mxu0 0
    %543 = vmatprep.subr.bf16.mxu0 0
    %544 = vmatpush2.bf16.msra.mxu0 0
    %545 = vmatprep.subr.bf16.mxu0 0
    %546 = vmatpush2.bf16.msra.mxu0 0
    %547 = vmatprep.subr.bf16.mxu0 0
    %548 = vmatpush2.bf16.msra.mxu0 0
    %549 = vmatprep.subr.bf16.mxu0 0
    %550 = vmatpush2.bf16.msra.mxu0 0
    %551 = vmatprep.subr.bf16.mxu0 0
    %552 = vmatpush2.bf16.msra.mxu0 0
    %553 = vmatprep.subr.bf16.mxu0 0
    %554 = vmatpush2.bf16.msra.mxu0 0
    %555 = vmatprep.mubr.bf16.mxu0 0
    %556 = vmatmul.mubr.bf16.gmra.mxu0 %v452
    %v557 = vpop.f32.mrf.mxu0
    %v558 = vadd.f32 %v474, %v557
    %v559 = vpop.f32.mrf.mxu0
    %v560 = vpop.f32.mrf.mxu0
    %v561 = vpop.f32.mrf.mxu0
    %562 = vdwg.mxu0
    %v563 = vpack.c.bf16 %v558, %v558
    %564 = vst [vmem:[#allocation7] sm:$0xf] %v563
    // Predicated region
    $region30: #{tpu_custom_call.1} parent=1 // pred_check
      _
    $region31: #{tpu_custom_call.1} parent=1 // pred_check_branch
      %566 = sbr.rel (0) target = $region33
    $region32: #{tpu_custom_call.1} parent=1 // pred_region
      %s568 = ssub.s32 64, 64
      %569 = vsyncadd [#allocation4], %s568
      %s571 = sshll.u32 [#allocation7], 4
      %s572 = int_to_ptr.vmem [resolvable:$true] %s571
      %574 = dma.vmem_to_hbm [thread:$0]  %s572, 64, %s5, [#allocation4]
    $region33: #{tpu_custom_call.1} parent=1 // pred_fallthru
      _
    // Predicated region
    $region34: #{tpu_custom_call.1} parent=1 // pred_check
      _
    $region35: #{tpu_custom_call.1} parent=1 // pred_check_branch
      %576 = sbr.rel (0) target = $region37
    $region36: #{tpu_custom_call.1} parent=1 // pred_region
      %577 = dma.done [#allocation4], 64
    $region37: #{tpu_custom_call.1} parent=1 // pred_fallthru
      _
    %578 = vsyncpa [#allocation3], 1
    %579 = vsyncpa [#allocation6], 1
    %580 = vsyncpa [#allocation4], 1

</llo_original>
